<compile_context>
chip_gen: v6e
topology: v6e:2x2x1
jax: 0.10.0
libtpu: 0.0.40
codegen_flags: <defaults>
</compile_context>

<pallas_src>
import functools

import jax
import jax.numpy as jnp
from jax.experimental import pallas as pl
from jax.experimental.pallas import tpu as pltpu

_LANE = 128


def _round_up(v, m):
    return (v + m - 1) // m * m


def _pad2d(a, rows, cols):
    r, c = a.shape
    if r == rows and c == cols:
        return a
    return jnp.pad(a, ((0, rows - r), (0, cols - c)))


def _vmem_capacity_bytes():
    try:
        return int(pltpu.get_tpu_info().vmem_capacity_bytes)
    except Exception:
        return 64 << 20  # conservative fallback (v7x per-TensorCore VMEM)


def _sublane_multiple(dtype):
    # Rows per packed sublane tile: f32 -> 8, bf16 -> 16, int8/fp8 -> 32.
    return max(8, 8 * (4 // max(1, jnp.dtype(dtype).itemsize)))


def _divisor_tile(dim, cap=512):
    # Largest multiple of 128 that divides `dim` and is <= cap (dim is a
    # multiple of 128 by construction, so 128 always works).
    for t in (cap, 384, 256, 128):
        if t <= dim and dim % t == 0:
            return t
    return min(dim, 128)


# --------------------------------------------------------------------------
# Fused whole-stack kernel (weights fully resident in VMEM)
# --------------------------------------------------------------------------
def _fused_linear_n_kernel(*refs, activations, has_bias, compute_dtype):
    """Apply the whole LinearN stack to one (batch_tile, padded_feat) block.

    refs = (x_ref, w0, [b0], w1, [b1], ..., o_ref). Bias refs exist only for
    layers with use_bias=True. Intermediates live in VMEM/vregs only.
    """
    x_ref = refs[0]
    o_ref = refs[-1]
    param_refs = refs[1:-1]

    y = x_ref[...]
    idx = 0
    for li, act in enumerate(activations):
        w_ref = param_refs[idx]
        idx += 1
        # Weights already arrive in compute_dtype (cast HBM-side in wrapper);
        # only the small activation tile is cast per layer.
        y = jnp.dot(y.astype(compute_dtype), w_ref[...],
                    preferred_element_type=jnp.float32)
        if has_bias[li]:
            b_ref = param_refs[idx]
            idx += 1
            y = y + b_ref[...]  # bias kept in f32, added to f32 accumulator
        if act == "relu":
            y = jnp.maximum(y, 0.0)
        elif act == "identity":
            pass
        else:
            raise ValueError(f"unsupported activation: {act}")
    o_ref[...] = y.astype(o_ref.dtype)


# --------------------------------------------------------------------------
# Streaming fallback: one K-blocked tiled-matmul pallas_call per layer
# --------------------------------------------------------------------------
def _streamed_layer_kernel(*refs, act, has_bias):
    if has_bias:
        x_ref, w_ref, b_ref, o_ref, acc_ref = refs
    else:
        x_ref, w_ref, o_ref, acc_ref = refs
        b_ref = None
    k = pl.program_id(2)

    @pl.when(k == 0)
    def _():
        acc_ref[...] = jnp.zeros_like(acc_ref)

    acc_ref[...] += jnp.dot(x_ref[...], w_ref[...],
                            preferred_element_type=jnp.float32)

    @pl.when(k == pl.num_programs(2) - 1)
    def _():
        y = acc_ref[...]
        if has_bias:
            y = y + b_ref[...]
        if act == "relu":
            y = jnp.maximum(y, 0.0)
        o_ref[...] = y.astype(o_ref.dtype)


def _streamed_layer(x_p, w_p, b_p, act, *, tm, out_dtype, vmem_cap):
    mp, kp = x_p.shape
    _, np_ = w_p.shape
    tk = _divisor_tile(kp)
    tn = _divisor_tile(np_)
    grid = (mp // tm, np_ // tn, kp // tk)
    has_bias = b_p is not None

    in_specs = [pl.BlockSpec((tm, tk), lambda i, j, k: (i, k)),
                pl.BlockSpec((tk, tn), lambda i, j, k: (k, j))]
    inputs = [x_p, w_p]
    if has_bias:
        in_specs.append(pl.BlockSpec((1, tn), lambda i, j, k: (0, j)))
        inputs.append(b_p)

    c_item = jnp.dtype(x_p.dtype).itemsize
    per_step = 2 * (tm * tk + tk * tn) * c_item           # double-buffered x/w
    per_step += 2 * tm * tn * jnp.dtype(out_dtype).itemsize  # out tile
    per_step += tm * tn * 4                                # f32 accumulator
    vmem_limit = int(min(vmem_cap, max(per_step + (2 << 20), 4 << 20)))

    kernel = functools.partial(_streamed_layer_kernel, act=act, has_bias=has_bias)
    return pl.pallas_call(
        kernel,
        out_shape=jax.ShapeDtypeStruct((mp, np_), out_dtype),
        grid=grid,
        in_specs=in_specs,
        out_specs=pl.BlockSpec((tm, tn), lambda i, j, k: (i, j)),
        scratch_shapes=[pltpu.VMEM((tm, tn), jnp.float32)],
        compiler_params=pltpu.CompilerParams(
            dimension_semantics=("parallel", "parallel", "arbitrary"),
            vmem_limit_bytes=vmem_limit,
        ),
    )(*inputs)


# --------------------------------------------------------------------------
# Public forward
# --------------------------------------------------------------------------
def linear_n_forward(x, params, activations, use_bias, *,
                     batch_tile=None, compute_dtype=jnp.bfloat16,
                     force_streaming=False):
    """LinearN forward. Fused single pallas_call when params fit VMEM."""
    n, k0 = x.shape
    num_layers = len(params)
    assert num_layers == len(activations) == len(use_bias) >= 1
    out_dtype = x.dtype
    compute_dtype = jnp.dtype(compute_dtype)

    capacity = _vmem_capacity_bytes()
    vmem_cap = int(capacity * 0.85)  # ~108 MiB on v5e/v6e, ~54 MiB on v7x

    if batch_tile is None:
        # Bigger tiles amortize per-step overhead better when VMEM allows.
        batch_tile = 512 if capacity >= (100 << 20) else 256

    # --- lane-dense feature padding (done once, HBM-side) --------------------
    feat = [k0] + [w.shape[1] for (w, _) in params]
    feat_pad = [_round_up(max(f, 1), _LANE) for f in feat]

    # --- batch tiling: parallel grid axis, sublane-packing aware -------------
    sub = _sublane_multiple(compute_dtype)
    tn = min(_round_up(n, sub), _round_up(batch_tile, sub))
    if n > sub and _round_up(n, tn) // tn < 2:
        # Ensure >=2 grid steps so both v7x TensorCores get work.
        tn = max(sub, _round_up(pl.cdiv(n, 2), sub))
    n_pad = _round_up(n, tn)
    grid = (n_pad // tn,)

    # --- cast + pad all operands HBM-side ------------------------------------
    x_c = _pad2d(x.astype(compute_dtype), n_pad, feat_pad[0])
    weights_c, biases_f32 = [], []
    for li, ((w, b), ub) in enumerate(zip(params, use_bias)):
        assert w.shape == (feat[li], feat[li + 1])
        weights_c.append(
            _pad2d(w.astype(compute_dtype), feat_pad[li], feat_pad[li + 1]))
        if ub:
            biases_f32.append(
                _pad2d(jnp.asarray(b, jnp.float32).reshape(1, -1),
                       1, feat_pad[li + 1]))
        else:
            biases_f32.append(None)  # no bias DMA at all
    has_bias = tuple(bool(u) for u in use_bias)

    # --- VMEM estimate (single-buffered weights, ~2 live f32 activations) ----
    c_item = compute_dtype.itemsize
    o_item = jnp.dtype(out_dtype).itemsize
    weight_bytes = sum(int(w.size) * c_item for w in weights_c)
    bias_bytes = sum(int(b.size) * 4 for b in biases_f32 if b is not None)
    resident = (weight_bytes + bias_bytes
                + 2 * tn * feat_pad[0] * c_item      # x tile, double-buffered
                + 2 * tn * feat_pad[-1] * o_item     # out tile, double-buffered
                + 2 * tn * max(feat_pad) * 4)        # ping-pong f32 activations

    if force_streaming or resident > vmem_cap:
        # TODO(synk): fully-fused weight streaming (nested pltpu.emit_pipeline
        # inside one pallas_call); for now each layer is its own K-blocked
        # pallas_call, so intermediates round-trip HBM once per layer.
        y = x_c
        for li in range(num_layers):
            last = li == num_layers - 1
            y = _streamed_layer(
                y, weights_c[li], biases_f32[li], activations[li],
                tm=tn, out_dtype=(out_dtype if last else compute_dtype),
                vmem_cap=vmem_cap)
        return y[:n, :feat[-1]]

    # --- fused path -----------------------------------------------------------
    def build_specs(single_buffer_weights):
        inputs = [x_c]
        in_specs = [pl.BlockSpec((tn, feat_pad[0]), lambda i: (i, 0))]
        for li in range(num_layers):
            wshape = (feat_pad[li], feat_pad[li + 1])
            if single_buffer_weights:
                in_specs.append(pl.BlockSpec(wshape, lambda i: (0, 0),
                                             pipeline_mode=pl.Buffered(1)))
            else:
                in_specs.append(pl.BlockSpec(wshape, lambda i: (0, 0)))
            inputs.append(weights_c[li])
            if has_bias[li]:
                bshape = (1, feat_pad[li + 1])
                if single_buffer_weights:
                    in_specs.append(pl.BlockSpec(bshape, lambda i: (0, 0),
                                                 pipeline_mode=pl.Buffered(1)))
                else:
                    in_specs.append(pl.BlockSpec(bshape, lambda i: (0, 0)))
                inputs.append(biases_f32[li])
        return inputs, in_specs

    out_specs = pl.BlockSpec((tn, feat_pad[-1]), lambda i: (i, 0))
    out_shape = jax.ShapeDtypeStruct((n_pad, feat_pad[-1]), out_dtype)
    flops = sum(2 * n_pad * feat_pad[li] * feat_pad[li + 1]
                for li in range(num_layers))
    kernel = functools.partial(
        _fused_linear_n_kernel, activations=tuple(activations),
        has_bias=has_bias, compute_dtype=compute_dtype)

    def run(single_buffer_weights):
        inputs, in_specs = build_specs(single_buffer_weights)
        bytes_accessed = sum(int(a.size) * a.dtype.itemsize for a in inputs)
        bytes_accessed += n_pad * feat_pad[-1] * o_item
        cost = pl.CostEstimate(flops=flops, transcendentals=0,
                               bytes_accessed=bytes_accessed)
        res = resident if single_buffer_weights else (
            resident + weight_bytes + bias_bytes)
        vmem_limit = int(min(vmem_cap, max(res + (2 << 20), 4 << 20)))
        return pl.pallas_call(
            kernel,
            out_shape=out_shape,
            grid=grid,
            in_specs=in_specs,
            out_specs=out_specs,
            compiler_params=pltpu.CompilerParams(
                dimension_semantics=("parallel",),
                vmem_limit_bytes=vmem_limit,
            ),
            cost_estimate=cost,
        )(*inputs)

    try:
        out_padded = run(single_buffer_weights=True)
    except Exception:
        # Fallback if this JAX/Mosaic build rejects Buffered(1) single-buffering.
        out_padded = run(single_buffer_weights=False)

    return out_padded[:n, :feat[-1]]


# --------------------------------------------------------------------------
# Reference + init
# --------------------------------------------------------------------------
def linear_n_reference(x, params, activations, use_bias):
    """Pure-JAX reference mirroring the PyTorch forward."""
    for (w, b), act, ub in zip(params, activations, use_bias):
        y = x @ w
        if ub:
            y = y + b
        if act == "relu":
            y = jnp.maximum(y, 0.0)
        x = y
    return x


def init_linear_n_params(key, in_size, out_sizes, dtype=jnp.float32):
    """Deterministic parameter init (uniform, Kaiming-like bound)."""
    params = []
    fan_in = in_size
    for out in out_sizes:
        key, kw, kb = jax.random.split(key, 3)
        bound = 1.0 / jnp.sqrt(jnp.asarray(fan_in, dtype))
        w = jax.random.uniform(kw, (fan_in, out), dtype, -bound, bound)
        b = jax.random.uniform(kb, (1, out), dtype, -bound, bound)
        params.append((w, b))
        fan_in = out
    return params


if __name__ == "__main__":
    # Small config consistent with the module: 2 stacked linear layers.
    batch = 8
    in_size = 32
    out_sizes = [64, 32]
    activations = ["relu", "identity"]   # e.g. [nn.ReLU(), nn.Identity()]
    use_bias = [True, False]

    key = jax.random.PRNGKey(0)
    key, kx = jax.random.split(key)
    x = jax.random.normal(kx, (batch, in_size), jnp.float32)
    params = init_linear_n_params(key, in_size, out_sizes)

    ref = linear_n_reference(x, params, activations, use_bias)

    # Default path: fused single pallas_call, bf16 MXU compute, f32 accumulation.
    out = jax.block_until_ready(
        linear_n_forward(x, params, activations, use_bias))
    assert out.shape == (batch, out_sizes[-1])
    assert out.dtype == x.dtype
    assert jnp.allclose(out, ref, atol=5e-2, rtol=5e-2), "fused bf16 mismatch"

    # Full-precision path stays tight vs the reference.
    out_f32 = jax.block_until_ready(
        linear_n_forward(x, params, activations, use_bias,
                         compute_dtype=jnp.float32))
    assert jnp.allclose(out_f32, ref, atol=1e-5, rtol=1e-5), "fused f32 mismatch"

    # Weight-streaming path (K-blocked per-layer matmul), forced for coverage.
    out_stream = jax.block_until_ready(
        linear_n_forward(x, params, activations, use_bias,
                         force_streaming=True))
    assert jnp.allclose(out_stream, ref, atol=5e-2, rtol=5e-2), "stream mismatch"

    print("KERNEL_OK")
</pallas_src>

<mosaic_0001>
module attributes {stable_mosaic.version = 11 : i64} {
  func.func @_fused_linear_n_kernel(%arg0: i32, %arg1: memref<16x128xbf16, #tpu.memory_space<vmem>>, %arg2: memref<128x128xbf16, #tpu.memory_space<vmem>>, %arg3: memref<1x128xf32, #tpu.memory_space<vmem>>, %arg4: memref<128x128xbf16, #tpu.memory_space<vmem>>, %arg5: memref<16x128xf32, #tpu.memory_space<vmem>>) attributes {dimension_semantics = [#tpu.dimension_semantics<parallel>], iteration_bounds = array<i64: 1>, scalar_prefetch = 0 : i64, scratch_operands = 0 : i64, tpu.core_type = #tpu.core_type<tc>, window_params = [{transform_indices = @transform_0, window_bounds = array<i64: 16, 128>}, {pipeline_mode = #tpu.pipeline_mode<synchronous>, transform_indices = @transform_1, window_bounds = array<i64: 128, 128>}, {pipeline_mode = #tpu.pipeline_mode<synchronous>, transform_indices = @transform_2, window_bounds = array<i64: 1, 128>}, {pipeline_mode = #tpu.pipeline_mode<synchronous>, transform_indices = @transform_3, window_bounds = array<i64: 128, 128>}, {transform_indices = @transform_4, window_bounds = array<i64: 16, 128>}]} {
    %c0 = arith.constant 0 : index
    %c0_0 = arith.constant 0 : index
    %0 = vector.load %arg1[%c0, %c0_0] : memref<16x128xbf16, #tpu.memory_space<vmem>>, vector<16x128xbf16>
    %c0_1 = arith.constant 0 : index
    %c0_2 = arith.constant 0 : index
    %1 = vector.load %arg2[%c0_1, %c0_2] : memref<128x128xbf16, #tpu.memory_space<vmem>>, vector<128x128xbf16>
    %cst = arith.constant dense<0.000000e+00> : vector<16x128xf32>
    %2 = tpu.matmul %0, %1, %cst {dimension_numbers = #tpu.dot_dimension_numbers<[1], [0], [0], [1], [0, 0, 1, 1], [], []>} : vector<16x128xbf16>, vector<128x128xbf16>, vector<16x128xf32> -> vector<16x128xf32>
    %c0_3 = arith.constant 0 : index
    %c0_4 = arith.constant 0 : index
    %3 = vector.load %arg3[%c0_3, %c0_4] : memref<1x128xf32, #tpu.memory_space<vmem>>, vector<1x128xf32>
    %4 = vector.broadcast %3 : vector<1x128xf32> to vector<16x128xf32>
    %5 = arith.addf %2, %4 : vector<16x128xf32>
    %cst_5 = arith.constant 0.000000e+00 : f32
    %6 = vector.broadcast %cst_5 : f32 to vector<16x128xf32>
    %7 = arith.maximumf %5, %6 : vector<16x128xf32>
    %8 = arith.truncf %7 : vector<16x128xf32> to vector<16x128xbf16>
    %c0_6 = arith.constant 0 : index
    %c0_7 = arith.constant 0 : index
    %9 = vector.load %arg4[%c0_6, %c0_7] : memref<128x128xbf16, #tpu.memory_space<vmem>>, vector<128x128xbf16>
    %cst_8 = arith.constant dense<0.000000e+00> : vector<16x128xf32>
    %10 = tpu.matmul %8, %9, %cst_8 {dimension_numbers = #tpu.dot_dimension_numbers<[1], [0], [0], [1], [0, 0, 1, 1], [], []>} : vector<16x128xbf16>, vector<128x128xbf16>, vector<16x128xf32> -> vector<16x128xf32>
    %c0_9 = arith.constant 0 : index
    %c0_10 = arith.constant 0 : index
    %11 = vector.load %arg5[%c0_9, %c0_10] : memref<16x128xf32, #tpu.memory_space<vmem>>, vector<16x128xf32>
    tpu.vector_store %arg5[%c0_9, %c0_10], %10 {strides = array<i32>} : memref<16x128xf32, #tpu.memory_space<vmem>>, vector<16x128xf32>,
    return
  }
  func.func @transform_0(%arg0: i32) -> (i32, i32) {
    %c0_i32 = arith.constant 0 : i32
    %c0_i32_0 = arith.constant 0 : i32
    return %arg0, %c0_i32 : i32, i32
  }
  func.func @transform_1(%arg0: i32) -> (i32, i32) {
    %c0_i32 = arith.constant 0 : i32
    %c0_i32_0 = arith.constant 0 : i32
    %c0_i32_1 = arith.constant 0 : i32
    return %c0_i32, %c0_i32_0 : i32, i32
  }
  func.func @transform_2(%arg0: i32) -> (i32, i32) {
    %c0_i32 = arith.constant 0 : i32
    %c0_i32_0 = arith.constant 0 : i32
    %c0_i32_1 = arith.constant 0 : i32
    return %c0_i32, %c0_i32_0 : i32, i32
  }
  func.func @transform_3(%arg0: i32) -> (i32, i32) {
    %c0_i32 = arith.constant 0 : i32
    %c0_i32_0 = arith.constant 0 : i32
    %c0_i32_1 = arith.constant 0 : i32
    return %c0_i32, %c0_i32_0 : i32, i32
  }
  func.func @transform_4(%arg0: i32) -> (i32, i32) {
    %c0_i32 = arith.constant 0 : i32
    %c0_i32_0 = arith.constant 0 : i32
    return %arg0, %c0_i32 : i32, i32
  }
}

module attributes {stable_mosaic.version = 11 : i64} {
  func.func @_fused_linear_n_kernel(%arg0: i32, %arg1: memref<16x128xbf16, #tpu.memory_space<vmem>>, %arg2: memref<128x128xbf16, #tpu.memory_space<vmem>>, %arg3: memref<1x128xf32, #tpu.memory_space<vmem>>, %arg4: memref<128x128xbf16, #tpu.memory_space<vmem>>, %arg5: memref<16x128xf32, #tpu.memory_space<vmem>>) attributes {dimension_semantics = [#tpu.dimension_semantics<parallel>], iteration_bounds = array<i64: 1>, scalar_prefetch = 0 : i64, scratch_operands = 0 : i64, tpu.core_type = #tpu.core_type<tc>, window_params = [{transform_indices = @transform_0, window_bounds = array<i64: 16, 128>}, {pipeline_mode = #tpu.pipeline_mode<synchronous>, transform_indices = @transform_1, window_bounds = array<i64: 128, 128>}, {pipeline_mode = #tpu.pipeline_mode<synchronous>, transform_indices = @transform_2, window_bounds = array<i64: 1, 128>}, {pipeline_mode = #tpu.pipeline_mode<synchronous>, transform_indices = @transform_3, window_bounds = array<i64: 128, 128>}, {transform_indices = @transform_4, window_bounds = array<i64: 16, 128>}]} {
    %c0 = arith.constant 0 : index
    %c0_0 = arith.constant 0 : index
    %0 = vector.load %arg1[%c0, %c0_0] : memref<16x128xbf16, #tpu.memory_space<vmem>>, vector<16x128xbf16>
    %c0_1 = arith.constant 0 : index
    %c0_2 = arith.constant 0 : index
    %1 = vector.load %arg2[%c0_1, %c0_2] : memref<128x128xbf16, #tpu.memory_space<vmem>>, vector<128x128xbf16>
    %cst = arith.constant dense<0.000000e+00> : vector<16x128xf32>
    %2 = tpu.matmul %0, %1, %cst {dimension_numbers = #tpu.dot_dimension_numbers<[1], [0], [0], [1], [0, 0, 1, 1], [], []>} : vector<16x128xbf16>, vector<128x128xbf16>, vector<16x128xf32> -> vector<16x128xf32>
    %c0_3 = arith.constant 0 : index
    %c0_4 = arith.constant 0 : index
    %3 = vector.load %arg3[%c0_3, %c0_4] : memref<1x128xf32, #tpu.memory_space<vmem>>, vector<1x128xf32>
    %4 = vector.broadcast %3 : vector<1x128xf32> to vector<16x128xf32>
    %5 = arith.addf %2, %4 : vector<16x128xf32>
    %cst_5 = arith.constant 0.000000e+00 : f32
    %6 = vector.broadcast %cst_5 : f32 to vector<16x128xf32>
    %7 = arith.maximumf %5, %6 : vector<16x128xf32>
    %8 = arith.truncf %7 : vector<16x128xf32> to vector<16x128xbf16>
    %c0_6 = arith.constant 0 : index
    %c0_7 = arith.constant 0 : index
    %9 = vector.load %arg4[%c0_6, %c0_7] : memref<128x128xbf16, #tpu.memory_space<vmem>>, vector<128x128xbf16>
    %cst_8 = arith.constant dense<0.000000e+00> : vector<16x128xf32>
    %10 = tpu.matmul %8, %9, %cst_8 {dimension_numbers = #tpu.dot_dimension_numbers<[1], [0], [0], [1], [0, 0, 1, 1], [], []>} : vector<16x128xbf16>, vector<128x128xbf16>, vector<16x128xf32> -> vector<16x128xf32>
    %c0_9 = arith.constant 0 : index
    %c0_10 = arith.constant 0 : index
    %11 = vector.load %arg5[%c0_9, %c0_10] : memref<16x128xf32, #tpu.memory_space<vmem>>, vector<16x128xf32>
    tpu.vector_store %arg5[%c0_9, %c0_10], %10 {strides = array<i32>} : memref<16x128xf32, #tpu.memory_space<vmem>>, vector<16x128xf32>,
    return
  }
  func.func @transform_0(%arg0: i32) -> (i32, i32) {
    %c0_i32 = arith.constant 0 : i32
    %c0_i32_0 = arith.constant 0 : i32
    return %arg0, %c0_i32 : i32, i32
  }
  func.func @transform_1(%arg0: i32) -> (i32, i32) {
    %c0_i32 = arith.constant 0 : i32
    %c0_i32_0 = arith.constant 0 : i32
    %c0_i32_1 = arith.constant 0 : i32
    return %c0_i32, %c0_i32_0 : i32, i32
  }
  func.func @transform_2(%arg0: i32) -> (i32, i32) {
    %c0_i32 = arith.constant 0 : i32
    %c0_i32_0 = arith.constant 0 : i32
    %c0_i32_1 = arith.constant 0 : i32
    return %c0_i32, %c0_i32_0 : i32, i32
  }
  func.func @transform_3(%arg0: i32) -> (i32, i32) {
    %c0_i32 = arith.constant 0 : i32
    %c0_i32_0 = arith.constant 0 : i32
    %c0_i32_1 = arith.constant 0 : i32
    return %c0_i32, %c0_i32_0 : i32, i32
  }
  func.func @transform_4(%arg0: i32) -> (i32, i32) {
    %c0_i32 = arith.constant 0 : i32
    %c0_i32_0 = arith.constant 0 : i32
    return %arg0, %c0_i32 : i32, i32
  }
}

</mosaic_0001>

<llo_original>
// kernel: tpu_custom_call.1
$region0: #{tpu_custom_call.1}
  #allocation0 [shape = 'u32[]', space=smem, size = 0x4, offset = 0x4, fixed_abs, tag = 'smem constant byte address 0x4 - core index']
  #allocation1 [shape = 'u32[144,128]{1,0:T(1,128)}', space=vmem, size = 0x12000, scoped, tag = 'internal scratch']
  %s0 = inlined_call_operand.hbm [shape: bf16[16,128], index: 0, kind: input, shape index: {}]
  %s1 = inlined_call_operand.hbm [shape: bf16[128,128], index: 1, kind: input, shape index: {}]
  %s2 = inlined_call_operand.vmem [shape: f32[1,128], index: 2, kind: input, shape index: {}]
  %s3 = inlined_call_operand.hbm [shape: bf16[128,128], index: 3, kind: input, shape index: {}]
  %s4 = inlined_call_operand.hbm [shape: f32[16,128], index: 4, kind: output, shape index: {}]
  %s5 = sld [smem:[#allocation0]]
  $region38: #{tpu_custom_call.1} parent=0
    _
  %s7 = ssub.s32 1, %s5
  %s8 = scalar_select 0, %s7, %s5
  $region1: #{tpu_custom_call.1} parent=0
    #allocation2 [shape = 'u8[4096]{0}', space=vmem, size = 0x1000, scoped, tag = 'input window, operand 0, single buffered']
    #allocation3 [shape = 's32[1]{0}', space=sflag, size = 0x4, scoped, tag = 'scoped memory for tpu_custom_call.1']
    #allocation4 [shape = 's32[1]{0}', space=sflag, size = 0x4, scoped, tag = 'scoped memory for tpu_custom_call.1']
    #allocation5 [shape = 'u8[32768]{0}', space=vmem, size = 0x8000, scoped, tag = 'input window, operand 1, single buffered']
    #allocation6 [shape = 's32[1]{0}', space=sflag, size = 0x4, scoped, tag = 'scoped memory for tpu_custom_call.1']
    #allocation7 [shape = 'u8[32768]{0}', space=vmem, size = 0x8000, scoped, tag = 'input window, operand 3, single buffered']
    #allocation8 [shape = 'u8[8192]{0}', space=vmem, size = 0x2000, scoped, tag = 'output window, operand 0, single buffered']
    %9 = vsyncpa [#allocation3], 0
    %10 = vsyncpa [#allocation6], 0
    %11 = vsyncpa [#allocation4], 0
    // Predicated region
    $region2: #{tpu_custom_call.1} parent=1 // pred_check
      _
    $region3: #{tpu_custom_call.1} parent=1 // pred_check_branch
      %13 = sbr.rel (0) target = $region5
    $region4: #{tpu_custom_call.1} parent=1 // pred_region
      %s15 = ssub.s32 128, 128
      %16 = vsyncadd [#allocation3], %s15
      %s17 = sshll.u32 [#allocation2], 4
      %s18 = int_to_ptr.vmem [resolvable:$true] %s17
      %23 = dma.hbm_to_vmem [thread:$0]  %s0, 128, %s18, [#allocation3], 64, 64, 4
    $region5: #{tpu_custom_call.1} parent=1 // pred_fallthru
      _
    // Predicated region
    $region6: #{tpu_custom_call.1} parent=1 // pred_check
      _
    $region7: #{tpu_custom_call.1} parent=1 // pred_check_branch
      %25 = sbr.rel (0) target = $region9
    $region8: #{tpu_custom_call.1} parent=1 // pred_region
      %s27 = ssub.s32 1024, 1024
      %28 = vsyncadd [#allocation6], %s27
      %s29 = sshll.u32 [#allocation5], 4
      %s30 = int_to_ptr.vmem [resolvable:$true] %s29
      %35 = dma.hbm_to_vmem [thread:$0]  %s1, 1024, %s30, [#allocation6], 64, 64, 4
    $region9: #{tpu_custom_call.1} parent=1 // pred_fallthru
      _
    // Predicated region
    $region10: #{tpu_custom_call.1} parent=1 // pred_check
      _
    $region11: #{tpu_custom_call.1} parent=1 // pred_check_branch
      %37 = sbr.rel (0) target = $region13
    $region12: #{tpu_custom_call.1} parent=1 // pred_region
      _
    $region13: #{tpu_custom_call.1} parent=1 // pred_fallthru
      _
    // Predicated region
    $region14: #{tpu_custom_call.1} parent=1 // pred_check
      _
    $region15: #{tpu_custom_call.1} parent=1 // pred_check_branch
      %39 = sbr.rel (0) target = $region17
    $region16: #{tpu_custom_call.1} parent=1 // pred_region
      %s41 = ssub.s32 1024, 1024
      %42 = vsyncadd [#allocation6], %s41
      %s43 = sshll.u32 [#allocation7], 4
      %s44 = int_to_ptr.vmem [resolvable:$true] %s43
      %49 = dma.hbm_to_vmem [thread:$0]  %s3, 1024, %s44, [#allocation6], 64, 64, 4
    $region17: #{tpu_custom_call.1} parent=1 // pred_fallthru
      _
    // Predicated region
    $region18: #{tpu_custom_call.1} parent=1 // pred_check
      _
    $region19: #{tpu_custom_call.1} parent=1 // pred_check_branch
      %51 = sbr.rel (0) target = $region21
    $region20: #{tpu_custom_call.1} parent=1 // pred_region
      %52 = dma.done [#allocation3], 128
    $region21: #{tpu_custom_call.1} parent=1 // pred_fallthru
      _
    // Predicated region
    $region22: #{tpu_custom_call.1} parent=1 // pred_check
      _
    $region23: #{tpu_custom_call.1} parent=1 // pred_check_branch
      %54 = sbr.rel (0) target = $region25
    $region24: #{tpu_custom_call.1} parent=1 // pred_region
      %55 = dma.done [#allocation6], 1024
    $region25: #{tpu_custom_call.1} parent=1 // pred_fallthru
      _
    // Predicated region
    $region26: #{tpu_custom_call.1} parent=1 // pred_check
      _
    $region27: #{tpu_custom_call.1} parent=1 // pred_check_branch
      %57 = sbr.rel (0) target = $region29
    $region28: #{tpu_custom_call.1} parent=1 // pred_region
      %58 = dma.done [#allocation6], 1024
    $region29: #{tpu_custom_call.1} parent=1 // pred_fallthru
      _
    %v60 = vld [vmem:[#allocation2] sm:$0xf]
    %v61 = vld [vmem:[#allocation2 + $0x4] sm:$0xf]
    %v62 = vld [vmem:[#allocation5] sm:$0xf]
    %v63 = vld [vmem:[#allocation5 + $0x4] sm:$0xf]
    %v64 = vld [vmem:[#allocation5 + $0x8] sm:$0xf]
    %v65 = vld [vmem:[#allocation5 + $0xc] sm:$0xf]
    %v66 = vld [vmem:[#allocation5 + $0x10] sm:$0xf]
    %v67 = vld [vmem:[#allocation5 + $0x14] sm:$0xf]
    %v68 = vld [vmem:[#allocation5 + $0x18] sm:$0xf]
    %v69 = vld [vmem:[#allocation5 + $0x1c] sm:$0xf]
    %v70 = vld [vmem:[#allocation5 + $0x20] sm:$0xf]
    %v71 = vld [vmem:[#allocation5 + $0x24] sm:$0xf]
    %v72 = vld [vmem:[#allocation5 + $0x28] sm:$0xf]
    %v73 = vld [vmem:[#allocation5 + $0x2c] sm:$0xf]
    %v74 = vld [vmem:[#allocation5 + $0x30] sm:$0xf]
    %v75 = vld [vmem:[#allocation5 + $0x34] sm:$0xf]
    %v76 = vld [vmem:[#allocation5 + $0x38] sm:$0xf]
    %v77 = vld [vmem:[#allocation5 + $0x3c] sm:$0xf]
    %v78 = vld [vmem:[%s2] sm:$0x1]
    %v80 = vlaneseq
    %v81 = vshrl.u32 %v80, 7
    %v82 = vsub.s32 0, %v81
    %v83 = vrot.slane %v78, %v82
    %v87 = vunpack.c.l.b16 %v60
    %v88 = vunpack.c.l.b16 %v61
    %v89 = vpack.c.b16 %v88, %v87
    %v107 = vunpack.c.l.b16 %v62
    %v108 = vunpack.c.l.b16 %v63
    %v109 = vunpack.c.l.b16 %v64
    %v110 = vunpack.c.l.b16 %v65
    %v111 = vunpack.c.l.b16 %v66
    %v112 = vunpack.c.l.b16 %v67
    %v113 = vunpack.c.l.b16 %v68
    %v114 = vunpack.c.l.b16 %v69
    %v115 = vunpack.c.l.b16 %v70
    %v116 = vunpack.c.l.b16 %v71
    %v117 = vunpack.c.l.b16 %v72
    %v118 = vunpack.c.l.b16 %v73
    %v119 = vunpack.c.l.b16 %v74
    %v120 = vunpack.c.l.b16 %v75
    %v121 = vunpack.c.l.b16 %v76
    %v122 = vunpack.c.l.b16 %v77
    %v123 = vpack.c.b16 %v108, %v107
    %v124 = vpack.c.b16 %v110, %v109
    %v125 = vpack.c.b16 %v112, %v111
    %v126 = vpack.c.b16 %v114, %v113
    %v127 = vpack.c.b16 %v116, %v115
    %v128 = vpack.c.b16 %v118, %v117
    %v129 = vpack.c.b16 %v120, %v119
    %v130 = vpack.c.b16 %v122, %v121
    %139 = vmatprep.subr.bf16.mxu0 0
    %140 = vmatpush1.bf16.msra.mxu0 %v130
    %141 = vmatprep.subr.bf16.mxu0 0
    %142 = vmatpush1.bf16.msra.mxu0 %v129
    %143 = vmatprep.subr.bf16.mxu0 0
    %144 = vmatpush1.bf16.msra.mxu0 %v128
    %145 = vmatprep.subr.bf16.mxu0 0
    %146 = vmatpush1.bf16.msra.mxu0 %v127
    %147 = vmatprep.subr.bf16.mxu0 0
    %148 = vmatpush1.bf16.msra.mxu0 %v126
    %149 = vmatprep.subr.bf16.mxu0 0
    %150 = vmatpush1.bf16.msra.mxu0 %v125
    %151 = vmatprep.subr.bf16.mxu0 0
    %152 = vmatpush1.bf16.msra.mxu0 %v124
    %153 = vmatprep.subr.bf16.mxu0 0
    %154 = vmatpush1.bf16.msra.mxu0 %v123
    %155 = vmatprep.subr.bf16.mxu0 0
    %156 = vmatpush2.bf16.msra.mxu0 0
    %157 = vmatprep.subr.bf16.mxu0 0
    %158 = vmatpush2.bf16.msra.mxu0 0
    %159 = vmatprep.subr.bf16.mxu0 0
    %160 = vmatpush2.bf16.msra.mxu0 0
    %161 = vmatprep.subr.bf16.mxu0 0
    %162 = vmatpush2.bf16.msra.mxu0 0
    %163 = vmatprep.subr.bf16.mxu0 0
    %164 = vmatpush2.bf16.msra.mxu0 0
    %165 = vmatprep.subr.bf16.mxu0 0
    %166 = vmatpush2.bf16.msra.mxu0 0
    %167 = vmatprep.subr.bf16.mxu0 0
    %168 = vmatpush2.bf16.msra.mxu0 0
    %169 = vmatprep.subr.bf16.mxu0 0
    %170 = vmatpush2.bf16.msra.mxu0 0
    %171 = vmatprep.mubr.bf16.mxu0 0
    %172 = vmatmul.mubr.bf16.gmra.mxu0 %v89
    %v173 = vpop.f32.mrf.mxu0
    %v174 = vadd.f32 %v83, %v173
    %v175 = vpop.f32.mrf.mxu0
    %v176 = vpop.f32.mrf.mxu0
    %v177 = vadd.f32 %v83, %v176
    %v178 = vpop.f32.mrf.mxu0
    %179 = vdwg.mxu0
    %v180 = vmax.f32 %v174, 0.0
    %v181 = vmax.f32 %v177, 0.0
    %v182 = vpack.c.bf16 %v181, %v180
    %v183 = vld [vmem:[#allocation7] sm:$0xf]
    %v184 = vld [vmem:[#allocation7 + $0x4] sm:$0xf]
    %v185 = vld [vmem:[#allocation7 + $0x8] sm:$0xf]
    %v186 = vld [vmem:[#allocation7 + $0xc] sm:$0xf]
    %v187 = vld [vmem:[#allocation7 + $0x10] sm:$0xf]
    %v188 = vld [vmem:[#allocation7 + $0x14] sm:$0xf]
    %v189 = vld [vmem:[#allocation7 + $0x18] sm:$0xf]
    %v190 = vld [vmem:[#allocation7 + $0x1c] sm:$0xf]
    %v191 = vld [vmem:[#allocation7 + $0x20] sm:$0xf]
    %v192 = vld [vmem:[#allocation7 + $0x24] sm:$0xf]
    %v193 = vld [vmem:[#allocation7 + $0x28] sm:$0xf]
    %v194 = vld [vmem:[#allocation7 + $0x2c] sm:$0xf]
    %v195 = vld [vmem:[#allocation7 + $0x30] sm:$0xf]
    %v196 = vld [vmem:[#allocation7 + $0x34] sm:$0xf]
    %v197 = vld [vmem:[#allocation7 + $0x38] sm:$0xf]
    %v198 = vld [vmem:[#allocation7 + $0x3c] sm:$0xf]
    %v215 = vunpack.c.l.b16 %v183
    %v216 = vunpack.c.l.b16 %v184
    %v217 = vunpack.c.l.b16 %v185
    %v218 = vunpack.c.l.b16 %v186
    %v219 = vunpack.c.l.b16 %v187
    %v220 = vunpack.c.l.b16 %v188
    %v221 = vunpack.c.l.b16 %v189
    %v222 = vunpack.c.l.b16 %v190
    %v223 = vunpack.c.l.b16 %v191
    %v224 = vunpack.c.l.b16 %v192
    %v225 = vunpack.c.l.b16 %v193
    %v226 = vunpack.c.l.b16 %v194
    %v227 = vunpack.c.l.b16 %v195
    %v228 = vunpack.c.l.b16 %v196
    %v229 = vunpack.c.l.b16 %v197
    %v230 = vunpack.c.l.b16 %v198
    %v231 = vpack.c.b16 %v216, %v215
    %v232 = vpack.c.b16 %v218, %v217
    %v233 = vpack.c.b16 %v220, %v219
    %v234 = vpack.c.b16 %v222, %v221
    %v235 = vpack.c.b16 %v224, %v223
    %v236 = vpack.c.b16 %v226, %v225
    %v237 = vpack.c.b16 %v228, %v227
    %v238 = vpack.c.b16 %v230, %v229
    %247 = vmatprep.subr.bf16.mxu0 0
    %248 = vmatpush1.bf16.msra.mxu0 %v238
    %249 = vmatprep.subr.bf16.mxu0 0
    %250 = vmatpush1.bf16.msra.mxu0 %v237
    %251 = vmatprep.subr.bf16.mxu0 0
    %252 = vmatpush1.bf16.msra.mxu0 %v236
    %253 = vmatprep.subr.bf16.mxu0 0
    %254 = vmatpush1.bf16.msra.mxu0 %v235
    %255 = vmatprep.subr.bf16.mxu0 0
    %256 = vmatpush1.bf16.msra.mxu0 %v234
    %257 = vmatprep.subr.bf16.mxu0 0
    %258 = vmatpush1.bf16.msra.mxu0 %v233
    %259 = vmatprep.subr.bf16.mxu0 0
    %260 = vmatpush1.bf16.msra.mxu0 %v232
    %261 = vmatprep.subr.bf16.mxu0 0
    %262 = vmatpush1.bf16.msra.mxu0 %v231
    %263 = vmatprep.subr.bf16.mxu0 0
    %264 = vmatpush2.bf16.msra.mxu0 0
    %265 = vmatprep.subr.bf16.mxu0 0
    %266 = vmatpush2.bf16.msra.mxu0 0
    %267 = vmatprep.subr.bf16.mxu0 0
    %268 = vmatpush2.bf16.msra.mxu0 0
    %269 = vmatprep.subr.bf16.mxu0 0
    %270 = vmatpush2.bf16.msra.mxu0 0
    %271 = vmatprep.subr.bf16.mxu0 0
    %272 = vmatpush2.bf16.msra.mxu0 0
    %273 = vmatprep.subr.bf16.mxu0 0
    %274 = vmatpush2.bf16.msra.mxu0 0
    %275 = vmatprep.subr.bf16.mxu0 0
    %276 = vmatpush2.bf16.msra.mxu0 0
    %277 = vmatprep.subr.bf16.mxu0 0
    %278 = vmatpush2.bf16.msra.mxu0 0
    %279 = vmatprep.mubr.bf16.mxu0 0
    %280 = vmatmul.mubr.bf16.gmra.mxu0 %v182
    %v281 = vpop.f32.mrf.mxu0
    %v282 = vadd.f32 0.0, %v281
    %v283 = vpop.f32.mrf.mxu0
    %v284 = vpop.f32.mrf.mxu0
    %v285 = vadd.f32 0.0, %v284
    %v286 = vpop.f32.mrf.mxu0
    %287 = vdwg.mxu0
    %288 = vst [vmem:[#allocation8] sm:$0xff] %v282
    %289 = vst [vmem:[#allocation8 + $0x8] sm:$0xff] %v285
    // Predicated region
    $region30: #{tpu_custom_call.1} parent=1 // pred_check
      _
    $region31: #{tpu_custom_call.1} parent=1 // pred_check_branch
      %291 = sbr.rel (0) target = $region33
    $region32: #{tpu_custom_call.1} parent=1 // pred_region
      %s293 = ssub.s32 256, 256
      %294 = vsyncadd [#allocation4], %s293
      %s295 = sshll.u32 [#allocation8], 4
      %s296 = int_to_ptr.vmem [resolvable:$true] %s295
      %301 = dma.vmem_to_hbm [thread:$0]  %s296, 256, %s4, [#allocation4], 128, 128, 8
    $region33: #{tpu_custom_call.1} parent=1 // pred_fallthru
      _
    // Predicated region
    $region34: #{tpu_custom_call.1} parent=1 // pred_check
      _
    $region35: #{tpu_custom_call.1} parent=1 // pred_check_branch
      %303 = sbr.rel (0) target = $region37
    $region36: #{tpu_custom_call.1} parent=1 // pred_region
      %304 = dma.done [#allocation4], 256
    $region37: #{tpu_custom_call.1} parent=1 // pred_fallthru
      _
    %305 = vsyncpa [#allocation3], 1
    %306 = vsyncpa [#allocation6], 1
    %307 = vsyncpa [#allocation4], 1

// kernel: tpu_custom_call.1
$region0: #{tpu_custom_call.1}
  #allocation0 [shape = 'u32[]', space=smem, size = 0x4, offset = 0x4, fixed_abs, tag = 'smem constant byte address 0x4 - core index']
  #allocation1 [shape = 'u32[144,128]{1,0:T(1,128)}', space=vmem, size = 0x12000, scoped, tag = 'internal scratch']
  %s0 = inlined_call_operand.hbm [shape: bf16[16,128], index: 0, kind: input, shape index: {}]
  %s1 = inlined_call_operand.hbm [shape: bf16[128,128], index: 1, kind: input, shape index: {}]
  %s2 = inlined_call_operand.vmem [shape: f32[1,128], index: 2, kind: input, shape index: {}]
  %s3 = inlined_call_operand.hbm [shape: bf16[128,128], index: 3, kind: input, shape index: {}]
  %s4 = inlined_call_operand.hbm [shape: f32[16,128], index: 4, kind: output, shape index: {}]
  %s5 = sld [smem:[#allocation0]]
  $region38: #{tpu_custom_call.1} parent=0
    _
  %s7 = ssub.s32 1, %s5
  %s8 = scalar_select 0, %s7, %s5
  $region1: #{tpu_custom_call.1} parent=0
    #allocation2 [shape = 'u8[4096]{0}', space=vmem, size = 0x1000, scoped, tag = 'input window, operand 0, single buffered']
    #allocation3 [shape = 's32[1]{0}', space=sflag, size = 0x4, scoped, tag = 'scoped memory for tpu_custom_call.1']
    #allocation4 [shape = 's32[1]{0}', space=sflag, size = 0x4, scoped, tag = 'scoped memory for tpu_custom_call.1']
    #allocation5 [shape = 'u8[32768]{0}', space=vmem, size = 0x8000, scoped, tag = 'input window, operand 1, single buffered']
    #allocation6 [shape = 's32[1]{0}', space=sflag, size = 0x4, scoped, tag = 'scoped memory for tpu_custom_call.1']
    #allocation7 [shape = 'u8[32768]{0}', space=vmem, size = 0x8000, scoped, tag = 'input window, operand 3, single buffered']
    #allocation8 [shape = 'u8[8192]{0}', space=vmem, size = 0x2000, scoped, tag = 'output window, operand 0, single buffered']
    %9 = vsyncpa [#allocation3], 0
    %10 = vsyncpa [#allocation6], 0
    %11 = vsyncpa [#allocation4], 0
    // Predicated region
    $region2: #{tpu_custom_call.1} parent=1 // pred_check
      _
    $region3: #{tpu_custom_call.1} parent=1 // pred_check_branch
      %13 = sbr.rel (0) target = $region5
    $region4: #{tpu_custom_call.1} parent=1 // pred_region
      %s15 = ssub.s32 128, 128
      %16 = vsyncadd [#allocation3], %s15
      %s17 = sshll.u32 [#allocation2], 4
      %s18 = int_to_ptr.vmem [resolvable:$true] %s17
      %23 = dma.hbm_to_vmem [thread:$0]  %s0, 128, %s18, [#allocation3], 64, 64, 4
    $region5: #{tpu_custom_call.1} parent=1 // pred_fallthru
      _
    // Predicated region
    $region6: #{tpu_custom_call.1} parent=1 // pred_check
      _
    $region7: #{tpu_custom_call.1} parent=1 // pred_check_branch
      %25 = sbr.rel (0) target = $region9
    $region8: #{tpu_custom_call.1} parent=1 // pred_region
      %s27 = ssub.s32 1024, 1024
      %28 = vsyncadd [#allocation6], %s27
      %s29 = sshll.u32 [#allocation5], 4
      %s30 = int_to_ptr.vmem [resolvable:$true] %s29
      %35 = dma.hbm_to_vmem [thread:$0]  %s1, 1024, %s30, [#allocation6], 64, 64, 4
    $region9: #{tpu_custom_call.1} parent=1 // pred_fallthru
      _
    // Predicated region
    $region10: #{tpu_custom_call.1} parent=1 // pred_check
      _
    $region11: #{tpu_custom_call.1} parent=1 // pred_check_branch
      %37 = sbr.rel (0) target = $region13
    $region12: #{tpu_custom_call.1} parent=1 // pred_region
      _
    $region13: #{tpu_custom_call.1} parent=1 // pred_fallthru
      _
    // Predicated region
    $region14: #{tpu_custom_call.1} parent=1 // pred_check
      _
    $region15: #{tpu_custom_call.1} parent=1 // pred_check_branch
      %39 = sbr.rel (0) target = $region17
    $region16: #{tpu_custom_call.1} parent=1 // pred_region
      %s41 = ssub.s32 1024, 1024
      %42 = vsyncadd [#allocation6], %s41
      %s43 = sshll.u32 [#allocation7], 4
      %s44 = int_to_ptr.vmem [resolvable:$true] %s43
      %49 = dma.hbm_to_vmem [thread:$0]  %s3, 1024, %s44, [#allocation6], 64, 64, 4
    $region17: #{tpu_custom_call.1} parent=1 // pred_fallthru
      _
    // Predicated region
    $region18: #{tpu_custom_call.1} parent=1 // pred_check
      _
    $region19: #{tpu_custom_call.1} parent=1 // pred_check_branch
      %51 = sbr.rel (0) target = $region21
    $region20: #{tpu_custom_call.1} parent=1 // pred_region
      %52 = dma.done [#allocation3], 128
    $region21: #{tpu_custom_call.1} parent=1 // pred_fallthru
      _
    // Predicated region
    $region22: #{tpu_custom_call.1} parent=1 // pred_check
      _
    $region23: #{tpu_custom_call.1} parent=1 // pred_check_branch
      %54 = sbr.rel (0) target = $region25
    $region24: #{tpu_custom_call.1} parent=1 // pred_region
      %55 = dma.done [#allocation6], 1024
    $region25: #{tpu_custom_call.1} parent=1 // pred_fallthru
      _
    // Predicated region
    $region26: #{tpu_custom_call.1} parent=1 // pred_check
      _
    $region27: #{tpu_custom_call.1} parent=1 // pred_check_branch
      %57 = sbr.rel (0) target = $region29
    $region28: #{tpu_custom_call.1} parent=1 // pred_region
      %58 = dma.done [#allocation6], 1024
    $region29: #{tpu_custom_call.1} parent=1 // pred_fallthru
      _
    %v60 = vld [vmem:[#allocation2] sm:$0xf]
    %v61 = vld [vmem:[#allocation2 + $0x4] sm:$0xf]
    %v62 = vld [vmem:[#allocation5] sm:$0xf]
    %v63 = vld [vmem:[#allocation5 + $0x4] sm:$0xf]
    %v64 = vld [vmem:[#allocation5 + $0x8] sm:$0xf]
    %v65 = vld [vmem:[#allocation5 + $0xc] sm:$0xf]
    %v66 = vld [vmem:[#allocation5 + $0x10] sm:$0xf]
    %v67 = vld [vmem:[#allocation5 + $0x14] sm:$0xf]
    %v68 = vld [vmem:[#allocation5 + $0x18] sm:$0xf]
    %v69 = vld [vmem:[#allocation5 + $0x1c] sm:$0xf]
    %v70 = vld [vmem:[#allocation5 + $0x20] sm:$0xf]
    %v71 = vld [vmem:[#allocation5 + $0x24] sm:$0xf]
    %v72 = vld [vmem:[#allocation5 + $0x28] sm:$0xf]
    %v73 = vld [vmem:[#allocation5 + $0x2c] sm:$0xf]
    %v74 = vld [vmem:[#allocation5 + $0x30] sm:$0xf]
    %v75 = vld [vmem:[#allocation5 + $0x34] sm:$0xf]
    %v76 = vld [vmem:[#allocation5 + $0x38] sm:$0xf]
    %v77 = vld [vmem:[#allocation5 + $0x3c] sm:$0xf]
    %v78 = vld [vmem:[%s2] sm:$0x1]
    %v80 = vlaneseq
    %v81 = vshrl.u32 %v80, 7
    %v82 = vsub.s32 0, %v81
    %v83 = vrot.slane %v78, %v82
    %v87 = vunpack.c.l.b16 %v60
    %v88 = vunpack.c.l.b16 %v61
    %v89 = vpack.c.b16 %v88, %v87
    %v107 = vunpack.c.l.b16 %v62
    %v108 = vunpack.c.l.b16 %v63
    %v109 = vunpack.c.l.b16 %v64
    %v110 = vunpack.c.l.b16 %v65
    %v111 = vunpack.c.l.b16 %v66
    %v112 = vunpack.c.l.b16 %v67
    %v113 = vunpack.c.l.b16 %v68
    %v114 = vunpack.c.l.b16 %v69
    %v115 = vunpack.c.l.b16 %v70
    %v116 = vunpack.c.l.b16 %v71
    %v117 = vunpack.c.l.b16 %v72
    %v118 = vunpack.c.l.b16 %v73
    %v119 = vunpack.c.l.b16 %v74
    %v120 = vunpack.c.l.b16 %v75
    %v121 = vunpack.c.l.b16 %v76
    %v122 = vunpack.c.l.b16 %v77
    %v123 = vpack.c.b16 %v108, %v107
    %v124 = vpack.c.b16 %v110, %v109
    %v125 = vpack.c.b16 %v112, %v111
    %v126 = vpack.c.b16 %v114, %v113
    %v127 = vpack.c.b16 %v116, %v115
    %v128 = vpack.c.b16 %v118, %v117
    %v129 = vpack.c.b16 %v120, %v119
    %v130 = vpack.c.b16 %v122, %v121
    %139 = vmatprep.subr.bf16.mxu0 0
    %140 = vmatpush1.bf16.msra.mxu0 %v130
    %141 = vmatprep.subr.bf16.mxu0 0
    %142 = vmatpush1.bf16.msra.mxu0 %v129
    %143 = vmatprep.subr.bf16.mxu0 0
    %144 = vmatpush1.bf16.msra.mxu0 %v128
    %145 = vmatprep.subr.bf16.mxu0 0
    %146 = vmatpush1.bf16.msra.mxu0 %v127
    %147 = vmatprep.subr.bf16.mxu0 0
    %148 = vmatpush1.bf16.msra.mxu0 %v126
    %149 = vmatprep.subr.bf16.mxu0 0
    %150 = vmatpush1.bf16.msra.mxu0 %v125
    %151 = vmatprep.subr.bf16.mxu0 0
    %152 = vmatpush1.bf16.msra.mxu0 %v124
    %153 = vmatprep.subr.bf16.mxu0 0
    %154 = vmatpush1.bf16.msra.mxu0 %v123
    %155 = vmatprep.subr.bf16.mxu0 0
    %156 = vmatpush2.bf16.msra.mxu0 0
    %157 = vmatprep.subr.bf16.mxu0 0
    %158 = vmatpush2.bf16.msra.mxu0 0
    %159 = vmatprep.subr.bf16.mxu0 0
    %160 = vmatpush2.bf16.msra.mxu0 0
    %161 = vmatprep.subr.bf16.mxu0 0
    %162 = vmatpush2.bf16.msra.mxu0 0
    %163 = vmatprep.subr.bf16.mxu0 0
    %164 = vmatpush2.bf16.msra.mxu0 0
    %165 = vmatprep.subr.bf16.mxu0 0
    %166 = vmatpush2.bf16.msra.mxu0 0
    %167 = vmatprep.subr.bf16.mxu0 0
    %168 = vmatpush2.bf16.msra.mxu0 0
    %169 = vmatprep.subr.bf16.mxu0 0
    %170 = vmatpush2.bf16.msra.mxu0 0
    %171 = vmatprep.mubr.bf16.mxu0 0
    %172 = vmatmul.mubr.bf16.gmra.mxu0 %v89
    %v173 = vpop.f32.mrf.mxu0
    %v174 = vadd.f32 %v83, %v173
    %v175 = vpop.f32.mrf.mxu0
    %v176 = vpop.f32.mrf.mxu0
    %v177 = vadd.f32 %v83, %v176
    %v178 = vpop.f32.mrf.mxu0
    %179 = vdwg.mxu0
    %v180 = vmax.f32 %v174, 0.0
    %v181 = vmax.f32 %v177, 0.0
    %v182 = vpack.c.bf16 %v181, %v180
    %v183 = vld [vmem:[#allocation7] sm:$0xf]
    %v184 = vld [vmem:[#allocation7 + $0x4] sm:$0xf]
    %v185 = vld [vmem:[#allocation7 + $0x8] sm:$0xf]
    %v186 = vld [vmem:[#allocation7 + $0xc] sm:$0xf]
    %v187 = vld [vmem:[#allocation7 + $0x10] sm:$0xf]
    %v188 = vld [vmem:[#allocation7 + $0x14] sm:$0xf]
    %v189 = vld [vmem:[#allocation7 + $0x18] sm:$0xf]
    %v190 = vld [vmem:[#allocation7 + $0x1c] sm:$0xf]
    %v191 = vld [vmem:[#allocation7 + $0x20] sm:$0xf]
    %v192 = vld [vmem:[#allocation7 + $0x24] sm:$0xf]
    %v193 = vld [vmem:[#allocation7 + $0x28] sm:$0xf]
    %v194 = vld [vmem:[#allocation7 + $0x2c] sm:$0xf]
    %v195 = vld [vmem:[#allocation7 + $0x30] sm:$0xf]
    %v196 = vld [vmem:[#allocation7 + $0x34] sm:$0xf]
    %v197 = vld [vmem:[#allocation7 + $0x38] sm:$0xf]
    %v198 = vld [vmem:[#allocation7 + $0x3c] sm:$0xf]
    %v215 = vunpack.c.l.b16 %v183
    %v216 = vunpack.c.l.b16 %v184
    %v217 = vunpack.c.l.b16 %v185
    %v218 = vunpack.c.l.b16 %v186
    %v219 = vunpack.c.l.b16 %v187
    %v220 = vunpack.c.l.b16 %v188
    %v221 = vunpack.c.l.b16 %v189
    %v222 = vunpack.c.l.b16 %v190
    %v223 = vunpack.c.l.b16 %v191
    %v224 = vunpack.c.l.b16 %v192
    %v225 = vunpack.c.l.b16 %v193
    %v226 = vunpack.c.l.b16 %v194
    %v227 = vunpack.c.l.b16 %v195
    %v228 = vunpack.c.l.b16 %v196
    %v229 = vunpack.c.l.b16 %v197
    %v230 = vunpack.c.l.b16 %v198
    %v231 = vpack.c.b16 %v216, %v215
    %v232 = vpack.c.b16 %v218, %v217
    %v233 = vpack.c.b16 %v220, %v219
    %v234 = vpack.c.b16 %v222, %v221
    %v235 = vpack.c.b16 %v224, %v223
    %v236 = vpack.c.b16 %v226, %v225
    %v237 = vpack.c.b16 %v228, %v227
    %v238 = vpack.c.b16 %v230, %v229
    %247 = vmatprep.subr.bf16.mxu0 0
    %248 = vmatpush1.bf16.msra.mxu0 %v238
    %249 = vmatprep.subr.bf16.mxu0 0
    %250 = vmatpush1.bf16.msra.mxu0 %v237
    %251 = vmatprep.subr.bf16.mxu0 0
    %252 = vmatpush1.bf16.msra.mxu0 %v236
    %253 = vmatprep.subr.bf16.mxu0 0
    %254 = vmatpush1.bf16.msra.mxu0 %v235
    %255 = vmatprep.subr.bf16.mxu0 0
    %256 = vmatpush1.bf16.msra.mxu0 %v234
    %257 = vmatprep.subr.bf16.mxu0 0
    %258 = vmatpush1.bf16.msra.mxu0 %v233
    %259 = vmatprep.subr.bf16.mxu0 0
    %260 = vmatpush1.bf16.msra.mxu0 %v232
    %261 = vmatprep.subr.bf16.mxu0 0
    %262 = vmatpush1.bf16.msra.mxu0 %v231
    %263 = vmatprep.subr.bf16.mxu0 0
    %264 = vmatpush2.bf16.msra.mxu0 0
    %265 = vmatprep.subr.bf16.mxu0 0
    %266 = vmatpush2.bf16.msra.mxu0 0
    %267 = vmatprep.subr.bf16.mxu0 0
    %268 = vmatpush2.bf16.msra.mxu0 0
    %269 = vmatprep.subr.bf16.mxu0 0
    %270 = vmatpush2.bf16.msra.mxu0 0
    %271 = vmatprep.subr.bf16.mxu0 0
    %272 = vmatpush2.bf16.msra.mxu0 0
    %273 = vmatprep.subr.bf16.mxu0 0
    %274 = vmatpush2.bf16.msra.mxu0 0
    %275 = vmatprep.subr.bf16.mxu0 0
    %276 = vmatpush2.bf16.msra.mxu0 0
    %277 = vmatprep.subr.bf16.mxu0 0
    %278 = vmatpush2.bf16.msra.mxu0 0
    %279 = vmatprep.mubr.bf16.mxu0 0
    %280 = vmatmul.mubr.bf16.gmra.mxu0 %v182
    %v281 = vpop.f32.mrf.mxu0
    %v282 = vadd.f32 0.0, %v281
    %v283 = vpop.f32.mrf.mxu0
    %v284 = vpop.f32.mrf.mxu0
    %v285 = vadd.f32 0.0, %v284
    %v286 = vpop.f32.mrf.mxu0
    %287 = vdwg.mxu0
    %288 = vst [vmem:[#allocation8] sm:$0xff] %v282
    %289 = vst [vmem:[#allocation8 + $0x8] sm:$0xff] %v285
    // Predicated region
    $region30: #{tpu_custom_call.1} parent=1 // pred_check
      _
    $region31: #{tpu_custom_call.1} parent=1 // pred_check_branch
      %291 = sbr.rel (0) target = $region33
    $region32: #{tpu_custom_call.1} parent=1 // pred_region
      %s293 = ssub.s32 256, 256
      %294 = vsyncadd [#allocation4], %s293
      %s295 = sshll.u32 [#allocation8], 4
      %s296 = int_to_ptr.vmem [resolvable:$true] %s295
      %301 = dma.vmem_to_hbm [thread:$0]  %s296, 256, %s4, [#allocation4], 128, 128, 8
    $region33: #{tpu_custom_call.1} parent=1 // pred_fallthru
      _
    // Predicated region
    $region34: #{tpu_custom_call.1} parent=1 // pred_check
      _
    $region35: #{tpu_custom_call.1} parent=1 // pred_check_branch
      %303 = sbr.rel (0) target = $region37
    $region36: #{tpu_custom_call.1} parent=1 // pred_region
      %304 = dma.done [#allocation4], 256
    $region37: #{tpu_custom_call.1} parent=1 // pred_fallthru
      _
    %305 = vsyncpa [#allocation3], 1
    %306 = vsyncpa [#allocation6], 1
    %307 = vsyncpa [#allocation4], 1

</llo_original>
